<compile_context>
chip_gen: v7x
topology: tpu7x:2x2x1
jax: 0.10.0
libtpu: 0.0.40
codegen_flags: <defaults>
</compile_context>

<pallas_src>
import jax
import jax.numpy as jnp
from jax.experimental import pallas as pl
from jax.experimental.pallas import tpu as pltpu

TR_MAX = 8192  # rows per tile (multiple of 8); ~3.6 MiB per f32 input block at width=110


def _make_kernel(rows, tr, ragged):
    def kernel(pred_ref, target_ref, w_ref, out_ref, acc_ref):
        i = pl.program_id(0)

        @pl.when(i == 0)
        def _init():
            acc_ref[...] = jnp.zeros_like(acc_ref)

        pred = pred_ref[...].astype(jnp.float32)    # (tr, width)  batch rows on sublanes,
        tgt = target_ref[...].astype(jnp.float32)   #              P*M measurements on lanes

        diff = pred - tgt
        l1 = jnp.abs(diff)
        l2 = diff * diff
        # rel = |pred-target| / (|target| + 1e-6) via EUP approx reciprocal (free slot)
        rel = l1 * pl.reciprocal(jnp.abs(tgt) + 1e-6, approx=True)
        # 0.4*huber(delta=1) + 0.4*l2  ==  where(l1 < 1, 0.6*l2, 0.4*l2 + 0.4*l1 - 0.2)
        core = jnp.where(l1 < 1.0, 0.6 * l2, 0.4 * l2 + 0.4 * l1 - 0.2) + 0.2 * rel

        if ragged:
            # Last tile hangs past the array end; OOB rows contain garbage -> mask with a
            # select (not a multiply) so Inf/NaN in dead rows cannot leak into the sum.
            valid = rows - i * tr
            row_id = jax.lax.broadcasted_iota(jnp.int32, core.shape, 0)
            core = jnp.where(row_id < valid, core, 0.0)

        # Reduce batch rows each step; weight (with 1/(B*M) folded in) applied once at the end.
        acc_ref[...] += jnp.sum(core, axis=0, keepdims=True)

        @pl.when(i == pl.num_programs(0) - 1)
        def _finalize():
            total = jnp.sum(acc_ref[...] * w_ref[...])
            out_ref[...] = jnp.zeros_like(out_ref) + total

    return kernel


def weighted_loss(pred, target, measurement_weights=None):
    """Pallas TPU WeightedLoss.forward. pred/target: (B, M); returns scalar f32 mean loss."""
    B, M = pred.shape
    if measurement_weights is None:
        measurement_weights = jnp.ones((M,), dtype=jnp.float32)

    # Copy-free lane-dense layout: pack P batch rows into the lane axis via a contiguous
    # reshape (B, M) -> (B//P, P*M).  No padding, no transpose, no extra HBM pass.
    pmax = max(1, 128 // M)
    P = 1
    for p in range(min(pmax, B), 0, -1):
        if B % p == 0:
            P = p
            break
    rows, width = B // P, P * M

    pred2 = pred.astype(jnp.float32).reshape(rows, width)
    target2 = target.astype(jnp.float32).reshape(rows, width)
    # Per-lane-column weight; the mean's 1/(B*M) is folded in so the kernel is a pure sum.
    w_row = (jnp.tile(measurement_weights.astype(jnp.float32), P)
             / jnp.float32(B * M)).reshape(1, width)

    if rows <= TR_MAX:
        tr = rows          # single tile: full-dim block needs no 8-divisibility
    else:
        tr = TR_MAX        # multiple of 8
    ngrid = pl.cdiv(rows, tr)
    ragged = (rows % tr) != 0

    kernel = _make_kernel(rows, tr, ragged)

    out = pl.pallas_call(
        kernel,
        out_shape=jax.ShapeDtypeStruct((1, 1), jnp.float32),
        grid_spec=pltpu.PrefetchScalarGridSpec(
            num_scalar_prefetch=0,
            grid=(ngrid,),
            in_specs=[
                pl.BlockSpec((tr, width), lambda i: (i, 0)),
                pl.BlockSpec((tr, width), lambda i: (i, 0)),
                pl.BlockSpec((1, width), lambda i: (0, 0)),   # constant block -> fetched once
            ],
            out_specs=pl.BlockSpec((1, 1), lambda i: (0, 0)),
            scratch_shapes=[pltpu.VMEM((1, width), jnp.float32)],
        ),
        compiler_params=pltpu.CompilerParams(
            dimension_semantics=("arbitrary",),       # reduction axis
            vmem_limit_bytes=32 * 1024 * 1024,        # room for 2 inputs x 2 buffers at TR_MAX
        ),
        cost_estimate=pl.CostEstimate(
            flops=13 * B * M,
            transcendentals=B * M,
            bytes_accessed=8 * B * M + 4 * M + 4,
        ),
    )(pred2, target2, w_row)

    # TODO(synk): on v7x, shard the row-tile axis across both TensorCores
    # (pltpu.CORE_PARALLEL / pl.core_map) with one partial-sum output block per core.
    return out[0, 0]


def _reference(pred, target, w):
    diff = pred - target
    l1 = jnp.abs(diff)
    l2 = diff * diff
    rel = l1 / (jnp.abs(target) + 1e-6)
    delta = 1.0
    huber = jnp.where(l1 < delta, 0.5 * l2, delta * l1 - 0.5 * delta ** 2)
    return jnp.mean((0.4 * huber + 0.4 * l2 + 0.2 * rel) * w.reshape(1, -1))


if __name__ == "__main__":
    key = jax.random.PRNGKey(0)
    k1, k2, k3 = jax.random.split(key, 3)
    B, M = 8, 22  # 22 body measurements, as in the PyTorch module (torch.ones(22))
    pred = jax.random.normal(k1, (B, M), dtype=jnp.float32)
    target = jax.random.normal(k2, (B, M), dtype=jnp.float32) * 2.0
    weights = jax.random.uniform(k3, (M,), dtype=jnp.float32, minval=0.5, maxval=1.5)

    loss = weighted_loss(pred, target, weights)
    loss = jax.block_until_ready(loss)

    ref = _reference(pred, target, weights)
    # approx=True reciprocal on the rel term carries ~2^-12 relative error -> slightly loose check
    assert jnp.allclose(loss, ref, rtol=1e-3, atol=1e-5), (loss, ref)
    print("KERNEL_OK")
</pallas_src>

<mosaic_0001>
module attributes {stable_mosaic.version = 11 : i64} {
  func.func @kernel(%arg0: i32, %arg1: memref<2x88xf32, #tpu.memory_space<vmem>>, %arg2: memref<2x88xf32, #tpu.memory_space<vmem>>, %arg3: memref<1x88xf32, #tpu.memory_space<vmem>>, %arg4: memref<1x1xf32, #tpu.memory_space<vmem>>, %arg5: memref<1x88xf32, #tpu.memory_space<vmem>>) attributes {dimension_semantics = [#tpu.dimension_semantics<arbitrary>], iteration_bounds = array<i64: 1>, scalar_prefetch = 0 : i64, scratch_operands = 1 : i64, tpu.core_type = #tpu.core_type<tc>, window_params = [{transform_indices = @transform_0, window_bounds = array<i64: 2, 88>}, {transform_indices = @transform_1, window_bounds = array<i64: 2, 88>}, {pipeline_mode = #tpu.pipeline_mode<synchronous>, transform_indices = @transform_2, window_bounds = array<i64: 1, 88>}, {pipeline_mode = #tpu.pipeline_mode<synchronous>, transform_indices = @transform_3, window_bounds = array<i64: 1, 1>}]} {
    %c0_i32 = arith.constant 0 : i32
    %0 = arith.cmpi eq, %arg0, %c0_i32 : i32
    %1 = arith.extui %0 : i1 to i32
    %c0_i32_0 = arith.constant 0 : i32
    %2 = arith.cmpi ne, %1, %c0_i32_0 : i32
    scf.if %2 {
      %cst_17 = arith.constant 0.000000e+00 : f32
      %36 = vector.broadcast %cst_17 : f32 to vector<1x88xf32>
      %c0_18 = arith.constant 0 : index
      %c0_19 = arith.constant 0 : index
      %37 = vector.load %arg5[%c0_18, %c0_19] : memref<1x88xf32, #tpu.memory_space<vmem>>, vector<1x88xf32>
      tpu.vector_store %arg5[%c0_18, %c0_19], %36 {strides = array<i32>} : memref<1x88xf32, #tpu.memory_space<vmem>>, vector<1x88xf32>,
    } else {
    }
    %c0 = arith.constant 0 : index
    %c0_1 = arith.constant 0 : index
    %3 = vector.load %arg1[%c0, %c0_1] : memref<2x88xf32, #tpu.memory_space<vmem>>, vector<2x88xf32>
    %c0_2 = arith.constant 0 : index
    %c0_3 = arith.constant 0 : index
    %4 = vector.load %arg2[%c0_2, %c0_3] : memref<2x88xf32, #tpu.memory_space<vmem>>, vector<2x88xf32>
    %5 = arith.subf %3, %4 : vector<2x88xf32>
    %6 = math.absf %5 : vector<2x88xf32>
    %7 = arith.mulf %5, %5 : vector<2x88xf32>
    %8 = math.absf %4 : vector<2x88xf32>
    %cst = arith.constant 9.99999997E-7 : f32
    %9 = vector.broadcast %cst : f32 to vector<2x88xf32>
    %10 = arith.addf %8, %9 : vector<2x88xf32>
    %11 = tpu.reciprocal %10 {approx = true} : vector<2x88xf32> -> vector<2x88xf32>
    %12 = arith.mulf %6, %11 : vector<2x88xf32>
    %cst_4 = arith.constant 1.000000e+00 : f32
    %13 = vector.broadcast %cst_4 : f32 to vector<2x88xf32>
    %14 = arith.cmpf olt, %6, %13 : vector<2x88xf32>
    %cst_5 = arith.constant 6.000000e-01 : f32
    %15 = vector.broadcast %cst_5 : f32 to vector<2x88xf32>
    %16 = arith.mulf %15, %7 : vector<2x88xf32>
    %cst_6 = arith.constant 4.000000e-01 : f32
    %17 = vector.broadcast %cst_6 : f32 to vector<2x88xf32>
    %18 = arith.mulf %17, %7 : vector<2x88xf32>
    %cst_7 = arith.constant 4.000000e-01 : f32
    %19 = vector.broadcast %cst_7 : f32 to vector<2x88xf32>
    %20 = arith.mulf %19, %6 : vector<2x88xf32>
    %21 = arith.addf %18, %20 : vector<2x88xf32>
    %cst_8 = arith.constant 2.000000e-01 : f32
    %22 = vector.broadcast %cst_8 : f32 to vector<2x88xf32>
    %23 = arith.subf %21, %22 : vector<2x88xf32>
    %24 = arith.select %14, %16, %23 : vector<2x88xi1>, vector<2x88xf32>
    %cst_9 = arith.constant 2.000000e-01 : f32
    %25 = vector.broadcast %cst_9 : f32 to vector<2x88xf32>
    %26 = arith.mulf %25, %12 : vector<2x88xf32>
    %27 = arith.addf %24, %26 : vector<2x88xf32>
    %c0_10 = arith.constant 0 : index
    %c0_11 = arith.constant 0 : index
    %28 = vector.load %arg5[%c0_10, %c0_11] : memref<1x88xf32, #tpu.memory_space<vmem>>, vector<1x88xf32>
    %cst_12 = arith.constant dense<0.000000e+00> : vector<88xf32>
    %29 = vector.multi_reduction <add>, %27, %cst_12 [0] : vector<2x88xf32> to vector<88xf32>
    %30 = vector.shape_cast %29 : vector<88xf32> to vector<1x88xf32>
    %31 = arith.addf %28, %30 : vector<1x88xf32>
    %c0_13 = arith.constant 0 : index
    %c0_14 = arith.constant 0 : index
    %32 = vector.load %arg5[%c0_13, %c0_14] : memref<1x88xf32, #tpu.memory_space<vmem>>, vector<1x88xf32>
    tpu.vector_store %arg5[%c0_13, %c0_14], %31 {strides = array<i32>} : memref<1x88xf32, #tpu.memory_space<vmem>>, vector<1x88xf32>,
    %c0_i32_15 = arith.constant 0 : i32
    %33 = arith.cmpi eq, %arg0, %c0_i32_15 : i32
    %34 = arith.extui %33 : i1 to i32
    %c0_i32_16 = arith.constant 0 : i32
    %35 = arith.cmpi ne, %34, %c0_i32_16 : i32
    scf.if %35 {
      %c0_17 = arith.constant 0 : index
      %c0_18 = arith.constant 0 : index
      %36 = vector.load %arg5[%c0_17, %c0_18] : memref<1x88xf32, #tpu.memory_space<vmem>>, vector<1x88xf32>
      %c0_19 = arith.constant 0 : index
      %c0_20 = arith.constant 0 : index
      %37 = vector.load %arg3[%c0_19, %c0_20] : memref<1x88xf32, #tpu.memory_space<vmem>>, vector<1x88xf32>
      %38 = arith.mulf %36, %37 : vector<1x88xf32>
      %39 = vector.shape_cast %38 : vector<1x88xf32> to vector<1x1x88xf32>
      %cst_21 = arith.constant dense<0.000000e+00> : vector<1xf32>
      %40 = vector.multi_reduction <add>, %39, %cst_21 [1, 2] : vector<1x1x88xf32> to vector<1xf32>
      %41 = vector.shape_cast %40 : vector<1xf32> to vector<1x1x1xf32>
      %42 = vector.extract %41[0, 0, 0] : f32 from vector<1x1x1xf32>
      %cst_22 = arith.constant 0.000000e+00 : f32
      %43 = vector.broadcast %cst_22 : f32 to vector<1x1xf32>
      %44 = vector.broadcast %42 : f32 to vector<1x1xf32>
      %45 = arith.addf %43, %44 : vector<1x1xf32>
      %c0_23 = arith.constant 0 : index
      %c0_24 = arith.constant 0 : index
      %46 = vector.load %arg4[%c0_23, %c0_24] : memref<1x1xf32, #tpu.memory_space<vmem>>, vector<1x1xf32>
      tpu.vector_store %arg4[%c0_23, %c0_24], %45 {strides = array<i32>} : memref<1x1xf32, #tpu.memory_space<vmem>>, vector<1x1xf32>,
    } else {
    }
    return
  }
  func.func @transform_0(%arg0: i32) -> (i32, i32) {
    %c0_i32 = arith.constant 0 : i32
    %c0_i32_0 = arith.constant 0 : i32
    return %arg0, %c0_i32 : i32, i32
  }
  func.func @transform_1(%arg0: i32) -> (i32, i32) {
    %c0_i32 = arith.constant 0 : i32
    %c0_i32_0 = arith.constant 0 : i32
    return %arg0, %c0_i32 : i32, i32
  }
  func.func @transform_2(%arg0: i32) -> (i32, i32) {
    %c0_i32 = arith.constant 0 : i32
    %c0_i32_0 = arith.constant 0 : i32
    %c0_i32_1 = arith.constant 0 : i32
    return %c0_i32, %c0_i32_0 : i32, i32
  }
  func.func @transform_3(%arg0: i32) -> (i32, i32) {
    %c0_i32 = arith.constant 0 : i32
    %c0_i32_0 = arith.constant 0 : i32
    %c0_i32_1 = arith.constant 0 : i32
    return %c0_i32, %c0_i32_0 : i32, i32
  }
}

</mosaic_0001>

<llo_original>
// kernel: tpu_custom_call.1
$region0: #{tpu_custom_call.1}
  #allocation0 [shape = 'u32[]', space=smem, size = 0x4, offset = 0x4, fixed_abs, tag = 'smem constant byte address 0x4 - core index']
  #allocation1 [shape = 'u32[144,128]{1,0:T(1,128)}', space=vmem, size = 0x12000, scoped, tag = 'internal scratch']
  #allocation2 [shape = 'f32[1,88]{1,0:T(1,128)}', space=vmem, size = 0x200, scoped, tag = 'scratch operand']
  %s0 = inlined_call_operand.hbm [shape: f32[2,88], index: 0, kind: input, shape index: {}]
  %s1 = inlined_call_operand.vmem [shape: f32[2,88], index: 1, kind: input, shape index: {}]
  %s2 = inlined_call_operand.vmem [shape: f32[1,88], index: 2, kind: input, shape index: {}]
  %s3 = inlined_call_operand.hbm [shape: f32[1,1], index: 3, kind: output, shape index: {}]
  %s4 = sld [smem:[#allocation0]]
  $region34: #{tpu_custom_call.1} parent=0
    _
  %s6 = ssub.s32 1, %s4
  %s7 = scalar_select 0, %s6, %s4
  $region1: #{tpu_custom_call.1} parent=0
    #allocation3 [shape = 'u8[1024]{0}', space=vmem, size = 0x400, scoped, tag = 'input window, operand 0, single buffered']
    #allocation4 [shape = 's32[1]{0}', space=sflag, size = 0x4, scoped, tag = 'scoped memory for tpu_custom_call.1']
    #allocation5 [shape = 's32[1]{0}', space=sflag, size = 0x4, scoped, tag = 'scoped memory for tpu_custom_call.1']
    #allocation6 [shape = 'u8[512]{0}', space=vmem, size = 0x400, scoped, tag = 'output window, operand 0, single buffered']
    %8 = vsyncpa [#allocation4], 0
    %9 = vsyncpa [#allocation5], 0
    // Predicated region
    $region2: #{tpu_custom_call.1} parent=1 // pred_check
      _
    $region3: #{tpu_custom_call.1} parent=1 // pred_check_branch
      %11 = sbr.rel (0) target = $region5
    $region4: #{tpu_custom_call.1} parent=1 // pred_region
      %s13 = ssub.s32 32, 32
      %14 = vsyncadd [#allocation4], %s13
      %s16 = sshll.u32 [#allocation3], 4
      %s17 = int_to_ptr.vmem [resolvable:$true] %s16
      %19 = dma.hbm_to_vmem [thread:$0]  %s0, 32, %s17, [#allocation4]
    $region5: #{tpu_custom_call.1} parent=1 // pred_fallthru
      _
    // Predicated region
    $region6: #{tpu_custom_call.1} parent=1 // pred_check
      _
    $region7: #{tpu_custom_call.1} parent=1 // pred_check_branch
      %21 = sbr.rel (0) target = $region9
    $region8: #{tpu_custom_call.1} parent=1 // pred_region
      _
    $region9: #{tpu_custom_call.1} parent=1 // pred_fallthru
      _
    // Predicated region
    $region10: #{tpu_custom_call.1} parent=1 // pred_check
      _
    $region11: #{tpu_custom_call.1} parent=1 // pred_check_branch
      %23 = sbr.rel (0) target = $region13
    $region12: #{tpu_custom_call.1} parent=1 // pred_region
      _
    $region13: #{tpu_custom_call.1} parent=1 // pred_fallthru
      _
    // Predicated region
    $region14: #{tpu_custom_call.1} parent=1 // pred_check
      _
    $region15: #{tpu_custom_call.1} parent=1 // pred_check_branch
      %25 = sbr.rel (0) target = $region17
    $region16: #{tpu_custom_call.1} parent=1 // pred_region
      %26 = dma.done [#allocation4], 32
    $region17: #{tpu_custom_call.1} parent=1 // pred_fallthru
      _
    %p27 = scmp.eq.s32.totalorder 0, 0
    // Predicated region
    $region18: #{tpu_custom_call.1} parent=1 // pred_check
      %p28 = pneg %p27
    $region19: #{tpu_custom_call.1} parent=1 // pred_check_branch
      %30 = sbr.rel (%p28) target = $region21
    $region20: #{tpu_custom_call.1} parent=1 // pred_region
      %vm31 = vcmask 712704
      %32 = vst.msk [vmem:[#allocation2] sm:$0x1] %vm31, 0.0
    $region21: #{tpu_custom_call.1} parent=1 // pred_fallthru
      _
    %v33 = vld [vmem:[#allocation3] sm:$0x3]
    %v34 = vld [vmem:[%s1] sm:$0x3]
    %v35 = vsub.f32 %v33, %v34
    %v36 = vand.u32 2147483647, %v35
    %v37 = vmul.f32 %v35, %v35
    %v38 = vand.u32 2147483647, %v34
    %v39 = vadd.f32 %v38, 1e-06
    %v40 = vrcp.pop %v39
    %v41 = vmul.f32 %v36, %v40
    %vm42 = vcmp.lt.f32.partialorder %v36, 1.0
    %v43 = vmul.f32 %v37, 0.6
    %v44 = vmul.f32 %v37, 0.4
    %v45 = vmul.f32 %v36, 0.4
    %v46 = vadd.f32 %v44, %v45
    %v47 = vsub.f32 %v46, 0.2
    %v48 = vsel %vm42, %v43, %v47
    %v49 = vmul.f32 %v41, 0.2
    %v50 = vadd.f32 %v48, %v49
    %v51 = vld [vmem:[#allocation2] sm:$0x1]
    %vm52 = vcmask 713728
    %v53 = vsel %vm52, %v50, 0.0
    %v54 = vrot.slane %v53, 4
    %v55 = vadd.f32 %v53, %v54
    %v56 = vrot.slane %v55, 2
    %v57 = vadd.f32 %v55, %v56
    %v58 = vrot.slane %v57, 1
    %v59 = vadd.f32 %v57, %v58
    %v60 = vadd.f32 %v51, %v59
    %vm61 = vcmask 712704
    %62 = vst.msk [vmem:[#allocation2] sm:$0x1] %vm61, %v60
    // Predicated region
    $region22: #{tpu_custom_call.1} parent=1 // pred_check
      %p63 = pneg %p27
    $region23: #{tpu_custom_call.1} parent=1 // pred_check_branch
      %65 = sbr.rel (%p63) target = $region25
    $region24: #{tpu_custom_call.1} parent=1 // pred_region
      %v66 = vld [vmem:[#allocation2] sm:$0x1]
      %v67 = vld [vmem:[%s2] sm:$0x1]
      %v68 = vmul.f32 %v66, %v67
      %v69 = vsel %vm61, %v68, 0.0
      %70 = vadd.xlane.f32.xlu0 %v69
      %v71 = vpop.xlane.xlu0 %70
      %v72 = vrot.slane %v71, 4
      %v73 = vadd.f32 %v71, %v72
      %v74 = vrot.slane %v73, 2
      %v75 = vadd.f32 %v73, %v74
      %v76 = vrot.slane %v75, 1
      %v77 = vadd.f32 %v75, %v76
      %s78 = vtos %v77
      %v79 = vstv %s78
      %v80 = vadd.f32 %v79, 0.0
      %vm81 = vcmask 0
      %82 = vst.msk [vmem:[#allocation6] sm:$0x1] %vm81, %v80
    $region25: #{tpu_custom_call.1} parent=1 // pred_fallthru
      _
    // Predicated region
    $region26: #{tpu_custom_call.1} parent=1 // pred_check
      _
    $region27: #{tpu_custom_call.1} parent=1 // pred_check_branch
      %84 = sbr.rel (0) target = $region29
    $region28: #{tpu_custom_call.1} parent=1 // pred_region
      %s86 = ssub.s32 16, 16
      %87 = vsyncadd [#allocation5], %s86
      %s89 = sshll.u32 [#allocation6], 4
      %s90 = int_to_ptr.vmem [resolvable:$true] %s89
      %92 = dma.vmem_to_hbm [thread:$0]  %s90, 16, %s3, [#allocation5]
    $region29: #{tpu_custom_call.1} parent=1 // pred_fallthru
      _
    // Predicated region
    $region30: #{tpu_custom_call.1} parent=1 // pred_check
      _
    $region31: #{tpu_custom_call.1} parent=1 // pred_check_branch
      %94 = sbr.rel (0) target = $region33
    $region32: #{tpu_custom_call.1} parent=1 // pred_region
      %95 = dma.done [#allocation5], 16
    $region33: #{tpu_custom_call.1} parent=1 // pred_fallthru
      _
    %96 = vsyncpa [#allocation4], 1
    %97 = vsyncpa [#allocation5], 1

</llo_original>
